<compile_context>
chip_gen: v7x
topology: tpu7x:2x2x1
jax: 0.10.0
libtpu: 0.0.40
codegen_flags: <defaults>
</compile_context>

<pallas_src>
import functools

import jax
import jax.numpy as jnp
from jax.experimental import pallas as pl
from jax.experimental.pallas import tpu as pltpu

_LANE = 128   # vreg lane width: final output padded to this for unmasked stores


def _round_up(x, m):
    return ((x + m - 1) // m) * m


def _apply_act(y, act):
    if act == "relu":
        return jnp.maximum(y, 0.0)
    if act == "tanh":
        return jnp.tanh(y)
    if act == "sigmoid":
        # Single EUP push per element; exact to f32 precision (vs exp + approx recip).
        return 0.5 * (jnp.tanh(0.5 * y) + 1.0)
    raise ValueError(f"unknown act {act!r}")


# ----------------------------- Pallas kernel -------------------------------
def _fused_mlp_kernel(*refs, act, n_layers, mxu_dtype):
    # refs = (x_ref, w0, b0, w1, b1, ..., out_ref).
    # x block: (TM, n_in); w_l: full (K_l, N_l) resident in VMEM (bf16);
    # b_l: (1, N_l) f32; out block: (TM, N_out_pad).
    x_ref = refs[0]
    out_ref = refs[-1]
    wb = refs[1:-1]

    h = x_ref[...].astype(jnp.float32)
    for l in range(n_layers):                    # static Python loop -> fully unrolled
        w = wb[2 * l][...]                       # already mxu_dtype (bf16)
        b = wb[2 * l + 1][...]                   # (1, N) f32, broadcast over batch tile
        h = jnp.dot(h.astype(mxu_dtype), w,
                    preferred_element_type=jnp.float32) + b
        h = _apply_act(h, act)
        # Dropout: identity in eval mode.
    out_ref[...] = h.astype(out_ref.dtype)


# ----------------------- one-time parameter preparation --------------------
def prepare_params(params, mxu_dtype=jnp.bfloat16):
    """Pad/cast parameters ONCE (not in the per-call path).

    Weights are stored [in_features, out_features] in `mxu_dtype`. Only the final
    layer's out-feature dim is zero-padded to a multiple of 128 (lane-dense output
    store); contraction dims and intermediate widths are left untouched.
    """
    n_layers = len(params)
    prepared = []
    for l, (w, b) in enumerate(params):
        k, n = w.shape
        n_pad = _round_up(n, _LANE) if l == n_layers - 1 else n
        w_p = jnp.zeros((k, n_pad), mxu_dtype).at[:, :n].set(w.astype(mxu_dtype))
        b_p = jnp.zeros((1, n_pad), jnp.float32).at[:, :n].set(b.astype(jnp.float32))
        prepared.append((w_p, b_p))
    return prepared


# ------------------------------ fused forward -------------------------------
def mlp_forward(x, prepared_params, *, act, out_features, mxu_dtype=jnp.bfloat16):
    """Fused MLP forward: one pallas_call, weights resident (single-buffered) in
    VMEM, batch tiled over a 'parallel' grid, bf16 MXU inputs with f32 epilogue."""
    B, n_in = x.shape
    n_layers = len(prepared_params)
    n_out_pad = prepared_params[-1][0].shape[1]

    # Batch tile: multiple of 16 rows (dense bf16 sublane packing), capped at 256 so
    # realistic batches get a multi-step grid (megacore sharding / pipelined DMAs).
    row_align = 16 if mxu_dtype == jnp.bfloat16 else 8
    tm = min(256, _round_up(B, row_align))
    b_pad = _round_up(B, tm)

    x_p = x if b_pad == B else jnp.zeros((b_pad, n_in), x.dtype).at[:B].set(x)

    # x / out are pipelined with blocked specs; weights & biases go in whole as
    # single-buffered VMEM-resident arrays (constant per grid step).
    in_specs = [pl.BlockSpec((tm, n_in), lambda i: (i, 0))]
    flat_params = []
    for (w_p, b_p) in prepared_params:
        flat_params += [w_p, b_p]
        in_specs += [
            pl.BlockSpec(memory_space=pltpu.MemorySpace.VMEM),
            pl.BlockSpec(memory_space=pltpu.MemorySpace.VMEM),
        ]
    out_specs = pl.BlockSpec((tm, n_out_pad), lambda i: (i, 0))

    # --- VMEM budget: single-buffered params + double-buffered x/out blocks ---
    itemsize_x = jnp.dtype(x.dtype).itemsize
    param_bytes = sum(
        int(w.size) * jnp.dtype(w.dtype).itemsize + int(b.size) * jnp.dtype(b.dtype).itemsize
        for (w, b) in prepared_params
    )
    act_block_bytes = 2 * tm * n_in * itemsize_x + 2 * tm * n_out_pad * itemsize_x
    footprint = param_bytes + act_block_bytes
    # >= default scoped limit on every generation, never above v7x's 64 MiB physical.
    vmem_limit = int(min(64 << 20, max(32 << 20, 2 * footprint + (4 << 20))))

    # --- Advisory cost estimate for XLA's scheduler ---
    flops = 2 * b_pad * sum(int(w.shape[0]) * int(w.shape[1]) for (w, _) in prepared_params)
    transcendentals = 0 if act == "relu" else b_pad * sum(
        int(w.shape[1]) for (w, _) in prepared_params)
    bytes_accessed = b_pad * n_in * itemsize_x + param_bytes + b_pad * n_out_pad * itemsize_x
    cost = pl.CostEstimate(flops=int(flops),
                           transcendentals=int(transcendentals),
                           bytes_accessed=int(bytes_accessed))

    kernel = functools.partial(_fused_mlp_kernel, act=act,
                               n_layers=n_layers, mxu_dtype=mxu_dtype)
    out_p = pl.pallas_call(
        kernel,
        out_shape=jax.ShapeDtypeStruct((b_pad, n_out_pad), x.dtype),
        grid=(b_pad // tm,),
        in_specs=in_specs,
        out_specs=out_specs,
        compiler_params=pltpu.CompilerParams(
            dimension_semantics=("parallel",),   # shards batch tiles across TCs on v7x
            vmem_limit_bytes=vmem_limit,
        ),
        cost_estimate=cost,
    )(x_p, *flat_params)

    # Slice away batch padding and the lane padding of the final layer.
    return out_p[:B, :out_features]


# ------------------------------ init & reference ----------------------------
def init_mlp_params(key, n_in, n_hidden):
    """Deterministic init mimicking nn.Linear default U(-1/sqrt(fan_in), +...).
    Weights stored [in_features, out_features] so the kernel computes x @ w + b.
    (final_fc exists in the module but is unused in forward; not allocated.)"""
    dims = [n_in] + list(n_hidden)
    params = []
    for i in range(len(dims) - 1):
        key, kw, kb = jax.random.split(key, 3)
        fan_in, fan_out = dims[i], dims[i + 1]
        bound = 1.0 / jnp.sqrt(fan_in)
        w = jax.random.uniform(kw, (fan_in, fan_out), jnp.float32, -bound, bound)
        b = jax.random.uniform(kb, (1, fan_out), jnp.float32, -bound, bound)
        params.append((w, b))
    return params


def mlp_reference(x, params, act, mxu_dtype=jnp.bfloat16):
    """Plain-JAX reference using the same bf16-rounded matmul inputs / f32 accumulate."""
    def a(y):
        if act == "relu":
            return jnp.maximum(y, 0.0)
        if act == "tanh":
            return jnp.tanh(y)
        return 0.5 * (jnp.tanh(0.5 * y) + 1.0)

    h = x.astype(jnp.float32)
    for (w, b) in params:
        hq = h.astype(mxu_dtype).astype(jnp.float32)
        wq = w.astype(mxu_dtype).astype(jnp.float32)
        h = a(hq @ wq + b)
    return h


# --------------------------------- main --------------------------------------
if __name__ == "__main__":
    # MLP(n_in=32, n_hidden=[64, 32], drop_p=0.1, n_out=10, act='relu'); batch=8.
    n_in = 32
    n_hidden = [64, 32]
    n_out = 10          # final_fc is not applied in forward
    act = "relu"
    batch = 8

    key = jax.random.PRNGKey(0)
    key, kx = jax.random.split(key)
    x = jax.random.normal(kx, (batch, n_in), jnp.float32)

    params = init_mlp_params(key, n_in, n_hidden)
    prepared = prepare_params(params)        # pad + bf16-cast ONCE, outside the call path

    fwd = jax.jit(functools.partial(mlp_forward, act=act, out_features=n_hidden[-1]))
    out = jax.block_until_ready(fwd(x, prepared))

    ref = mlp_reference(x, params, act)
    assert out.shape == (batch, n_hidden[-1]), out.shape
    max_err = float(jnp.max(jnp.abs(out - ref)))
    assert jnp.allclose(out, ref, atol=2e-3, rtol=2e-3), f"mismatch vs reference: {max_err}"

    print("KERNEL_OK")
</pallas_src>

<mosaic_0001>
module attributes {stable_mosaic.version = 11 : i64} {
  func.func @_fused_mlp_kernel(%arg0: i32, %arg1: memref<16x32xf32, #tpu.memory_space<vmem>>, %arg2: memref<32x64xbf16, #tpu.memory_space<vmem>>, %arg3: memref<1x64xf32, #tpu.memory_space<vmem>>, %arg4: memref<64x128xbf16, #tpu.memory_space<vmem>>, %arg5: memref<1x128xf32, #tpu.memory_space<vmem>>, %arg6: memref<16x128xf32, #tpu.memory_space<vmem>>) attributes {dimension_semantics = [#tpu.dimension_semantics<parallel>], iteration_bounds = array<i64: 1>, scalar_prefetch = 0 : i64, scratch_operands = 0 : i64, tpu.core_type = #tpu.core_type<tc>, window_params = [{transform_indices = @transform_0, window_bounds = array<i64: 16, 32>}, {pipeline_mode = #tpu.pipeline_mode<synchronous>, transform_indices = @transform_1, window_bounds = array<i64: 32, 64>}, {pipeline_mode = #tpu.pipeline_mode<synchronous>, transform_indices = @transform_2, window_bounds = array<i64: 1, 64>}, {pipeline_mode = #tpu.pipeline_mode<synchronous>, transform_indices = @transform_3, window_bounds = array<i64: 64, 128>}, {pipeline_mode = #tpu.pipeline_mode<synchronous>, transform_indices = @transform_4, window_bounds = array<i64: 1, 128>}, {transform_indices = @transform_5, window_bounds = array<i64: 16, 128>}]} {
    %c0 = arith.constant 0 : index
    %c0_0 = arith.constant 0 : index
    %0 = vector.load %arg1[%c0, %c0_0] : memref<16x32xf32, #tpu.memory_space<vmem>>, vector<16x32xf32>
    %c0_1 = arith.constant 0 : index
    %c0_2 = arith.constant 0 : index
    %1 = vector.load %arg2[%c0_1, %c0_2] : memref<32x64xbf16, #tpu.memory_space<vmem>>, vector<32x64xbf16>
    %c0_3 = arith.constant 0 : index
    %c0_4 = arith.constant 0 : index
    %2 = vector.load %arg3[%c0_3, %c0_4] : memref<1x64xf32, #tpu.memory_space<vmem>>, vector<1x64xf32>
    %3 = arith.truncf %0 : vector<16x32xf32> to vector<16x32xbf16>
    %cst = arith.constant dense<0.000000e+00> : vector<16x64xf32>
    %4 = tpu.matmul %3, %1, %cst {dimension_numbers = #tpu.dot_dimension_numbers<[1], [0], [0], [1], [0, 0, 1, 1], [], []>} : vector<16x32xbf16>, vector<32x64xbf16>, vector<16x64xf32> -> vector<16x64xf32>
    %5 = vector.broadcast %2 : vector<1x64xf32> to vector<16x64xf32>
    %6 = arith.addf %4, %5 : vector<16x64xf32>
    %cst_5 = arith.constant 0.000000e+00 : f32
    %7 = vector.broadcast %cst_5 : f32 to vector<16x64xf32>
    %8 = arith.maximumf %6, %7 : vector<16x64xf32>
    %c0_6 = arith.constant 0 : index
    %c0_7 = arith.constant 0 : index
    %9 = vector.load %arg4[%c0_6, %c0_7] : memref<64x128xbf16, #tpu.memory_space<vmem>>, vector<64x128xbf16>
    %c0_8 = arith.constant 0 : index
    %c0_9 = arith.constant 0 : index
    %10 = vector.load %arg5[%c0_8, %c0_9] : memref<1x128xf32, #tpu.memory_space<vmem>>, vector<1x128xf32>
    %11 = arith.truncf %8 : vector<16x64xf32> to vector<16x64xbf16>
    %cst_10 = arith.constant dense<0.000000e+00> : vector<16x128xf32>
    %12 = tpu.matmul %11, %9, %cst_10 {dimension_numbers = #tpu.dot_dimension_numbers<[1], [0], [0], [1], [0, 0, 1, 1], [], []>} : vector<16x64xbf16>, vector<64x128xbf16>, vector<16x128xf32> -> vector<16x128xf32>
    %13 = vector.broadcast %10 : vector<1x128xf32> to vector<16x128xf32>
    %14 = arith.addf %12, %13 : vector<16x128xf32>
    %cst_11 = arith.constant 0.000000e+00 : f32
    %15 = vector.broadcast %cst_11 : f32 to vector<16x128xf32>
    %16 = arith.maximumf %14, %15 : vector<16x128xf32>
    %c0_12 = arith.constant 0 : index
    %c0_13 = arith.constant 0 : index
    %17 = vector.load %arg6[%c0_12, %c0_13] : memref<16x128xf32, #tpu.memory_space<vmem>>, vector<16x128xf32>
    tpu.vector_store %arg6[%c0_12, %c0_13], %16 {strides = array<i32>} : memref<16x128xf32, #tpu.memory_space<vmem>>, vector<16x128xf32>,
    return
  }
  func.func @transform_0(%arg0: i32) -> (i32, i32) {
    %c0_i32 = arith.constant 0 : i32
    %c0_i32_0 = arith.constant 0 : i32
    return %arg0, %c0_i32 : i32, i32
  }
  func.func @transform_1(%arg0: i32) -> (i32, i32) {
    %c0_i32 = arith.constant 0 : i32
    %c0_i32_0 = arith.constant 0 : i32
    %c0_i32_1 = arith.constant 0 : i32
    return %c0_i32, %c0_i32_0 : i32, i32
  }
  func.func @transform_2(%arg0: i32) -> (i32, i32) {
    %c0_i32 = arith.constant 0 : i32
    %c0_i32_0 = arith.constant 0 : i32
    %c0_i32_1 = arith.constant 0 : i32
    return %c0_i32, %c0_i32_0 : i32, i32
  }
  func.func @transform_3(%arg0: i32) -> (i32, i32) {
    %c0_i32 = arith.constant 0 : i32
    %c0_i32_0 = arith.constant 0 : i32
    %c0_i32_1 = arith.constant 0 : i32
    return %c0_i32, %c0_i32_0 : i32, i32
  }
  func.func @transform_4(%arg0: i32) -> (i32, i32) {
    %c0_i32 = arith.constant 0 : i32
    %c0_i32_0 = arith.constant 0 : i32
    %c0_i32_1 = arith.constant 0 : i32
    return %c0_i32, %c0_i32_0 : i32, i32
  }
  func.func @transform_5(%arg0: i32) -> (i32, i32) {
    %c0_i32 = arith.constant 0 : i32
    %c0_i32_0 = arith.constant 0 : i32
    return %arg0, %c0_i32 : i32, i32
  }
}

</mosaic_0001>

<llo_original>
// kernel: mlp_forward.1
$region0: #{mlp_forward.1}
  #allocation0 [shape = 'u32[]', space=smem, size = 0x4, offset = 0x4, fixed_abs, tag = 'smem constant byte address 0x4 - core index']
  #allocation1 [shape = 'u32[144,128]{1,0:T(1,128)}', space=vmem, size = 0x12000, scoped, tag = 'internal scratch']
  %s0 = inlined_call_operand.vmem [shape: f32[16,32], index: 0, kind: input, shape index: {}]
  %s1 = inlined_call_operand.hbm [shape: bf16[32,64], index: 1, kind: input, shape index: {}]
  %s2 = inlined_call_operand.vmem [shape: f32[1,64], index: 2, kind: input, shape index: {}]
  %s3 = inlined_call_operand.vmem [shape: bf16[64,128], index: 3, kind: input, shape index: {}]
  %s4 = inlined_call_operand.vmem [shape: f32[1,128], index: 4, kind: input, shape index: {}]
  %s5 = inlined_call_operand.vmem [shape: f32[16,128], index: 5, kind: output, shape index: {}]
  %s6 = sld [smem:[#allocation0]]
  $region34: #{mlp_forward.1} parent=0
    _
  %s8 = ssub.s32 1, %s6
  %s9 = scalar_select 0, %s8, %s6
  $region1: #{mlp_forward.1} parent=0
    #allocation2 [shape = 'u8[8192]{0}', space=vmem, size = 0x2000, scoped, tag = 'input window, operand 1, single buffered']
    #allocation3 [shape = 's32[1]{0}', space=sflag, size = 0x4, scoped, tag = 'scoped memory for mlp_forward.1']
    %10 = vsyncpa [#allocation3], 0
    // Predicated region
    $region2: #{mlp_forward.1} parent=1 // pred_check
      _
    $region3: #{mlp_forward.1} parent=1 // pred_check_branch
      %12 = sbr.rel (0) target = $region5
    $region4: #{mlp_forward.1} parent=1 // pred_region
      _
    $region5: #{mlp_forward.1} parent=1 // pred_fallthru
      _
    // Predicated region
    $region6: #{mlp_forward.1} parent=1 // pred_check
      _
    $region7: #{mlp_forward.1} parent=1 // pred_check_branch
      %14 = sbr.rel (0) target = $region9
    $region8: #{mlp_forward.1} parent=1 // pred_region
      %s16 = ssub.s32 256, 256
      %17 = vsyncadd [#allocation3], %s16
      %s18 = sshll.u32 [#allocation2], 4
      %s19 = int_to_ptr.vmem [resolvable:$true] %s18
      %24 = dma.hbm_to_vmem [thread:$0]  %s1, 256, %s19, [#allocation3], 64, 64, 4
    $region9: #{mlp_forward.1} parent=1 // pred_fallthru
      _
    // Predicated region
    $region10: #{mlp_forward.1} parent=1 // pred_check
      _
    $region11: #{mlp_forward.1} parent=1 // pred_check_branch
      %26 = sbr.rel (0) target = $region13
    $region12: #{mlp_forward.1} parent=1 // pred_region
      _
    $region13: #{mlp_forward.1} parent=1 // pred_fallthru
      _
    // Predicated region
    $region14: #{mlp_forward.1} parent=1 // pred_check
      _
    $region15: #{mlp_forward.1} parent=1 // pred_check_branch
      %28 = sbr.rel (0) target = $region17
    $region16: #{mlp_forward.1} parent=1 // pred_region
      _
    $region17: #{mlp_forward.1} parent=1 // pred_fallthru
      _
    // Predicated region
    $region18: #{mlp_forward.1} parent=1 // pred_check
      _
    $region19: #{mlp_forward.1} parent=1 // pred_check_branch
      %30 = sbr.rel (0) target = $region21
    $region20: #{mlp_forward.1} parent=1 // pred_region
      _
    $region21: #{mlp_forward.1} parent=1 // pred_fallthru
      _
    // Predicated region
    $region22: #{mlp_forward.1} parent=1 // pred_check
      _
    $region23: #{mlp_forward.1} parent=1 // pred_check_branch
      %32 = sbr.rel (0) target = $region25
    $region24: #{mlp_forward.1} parent=1 // pred_region
      %33 = dma.done [#allocation3], 256
    $region25: #{mlp_forward.1} parent=1 // pred_fallthru
      _
    %v35 = vld [vmem:[%s0] sm:$0xff]
    %v36 = vld [vmem:[%s0 + $0x8] sm:$0xff]
    %v37 = vld [vmem:[#allocation2] sm:$0xf]
    %v38 = vld [vmem:[#allocation2 + $0x4] sm:$0xf]
    %v39 = vld [vmem:[#allocation2 + $0x8] sm:$0xf]
    %v40 = vld [vmem:[#allocation2 + $0xc] sm:$0xf]
    %v41 = vld [vmem:[%s2] sm:$0x1]
    %v42 = vpack.c.bf16 %v36, %v35
    %v44 = vlaneseq
    %v45 = vshrl.u32 %v44, 7
    %v46 = vsub.s32 0, %v45
    %v47 = vrot.slane %v41, %v46
    %v53 = vunpack.c.l.b16 %v37
    %v54 = vunpack.c.l.b16 %v38
    %v55 = vunpack.c.l.b16 %v39
    %v56 = vunpack.c.l.b16 %v40
    %v57 = vpack.c.b16 %v54, %v53
    %v58 = vpack.c.b16 %v56, %v55
    %vm61 = vcmask 261120
    %v63 = vsel %vm61, %v42, 0
    %65 = vmatprep.subr.bf16.mxu0 0
    %66 = vmatpush1.bf16.msra.mxu0 %v57
    %67 = vmatprep.subr.bf16.mxu0 0
    %68 = vmatpush1.bf16.msra.mxu0 %v58
    %69 = vmatprep.subr.bf16.mxu0 0
    %70 = vmatpush1.bf16.msra.mxu0 0
    %71 = vmatprep.subr.bf16.mxu0 0
    %72 = vmatpush1.bf16.msra.mxu0 0
    %73 = vmatprep.subr.bf16.mxu0 0
    %74 = vmatpush1.bf16.msra.mxu0 0
    %75 = vmatprep.subr.bf16.mxu0 0
    %76 = vmatpush1.bf16.msra.mxu0 0
    %77 = vmatprep.subr.bf16.mxu0 0
    %78 = vmatpush1.bf16.msra.mxu0 0
    %79 = vmatprep.subr.bf16.mxu0 0
    %80 = vmatpush1.bf16.msra.mxu0 0
    %81 = vmatprep.subr.bf16.mxu0 0
    %82 = vmatpush1.bf16.msra.mxu0 0
    %83 = vmatprep.subr.bf16.mxu0 0
    %84 = vmatpush1.bf16.msra.mxu0 0
    %85 = vmatprep.subr.bf16.mxu0 0
    %86 = vmatpush1.bf16.msra.mxu0 0
    %87 = vmatprep.subr.bf16.mxu0 0
    %88 = vmatpush1.bf16.msra.mxu0 0
    %89 = vmatprep.subr.bf16.mxu0 0
    %90 = vmatpush1.bf16.msra.mxu0 0
    %91 = vmatprep.subr.bf16.mxu0 0
    %92 = vmatpush1.bf16.msra.mxu0 0
    %93 = vmatprep.subr.bf16.mxu0 0
    %94 = vmatpush1.bf16.msra.mxu0 0
    %95 = vmatprep.subr.bf16.mxu0 0
    %96 = vmatpush1.bf16.msra.mxu0 0
    %97 = vmatprep.mubr.bf16.mxu0 0
    %98 = vmatmul.mubr.bf16.gmra.mrb[0].mxu0 %v63
    %v99 = vpop.f32.mrb[0].mxu0
    %v100 = vadd.f32 %v47, %v99
    %v101 = vpop.f32.mrb[0].mxu0
    %v102 = vpop.f32.mrb[0].mxu0
    %v103 = vadd.f32 %v47, %v102
    %v104 = vpop.f32.mrb[0].mxu0
    %105 = vdwg.mxu0
    %v106 = vmax.f32 %v100, 0.0
    %v107 = vmax.f32 %v103, 0.0
    %v108 = vld [vmem:[%s3] sm:$0xf]
    %v109 = vld [vmem:[%s3 + $0x4] sm:$0xf]
    %v110 = vld [vmem:[%s3 + $0x8] sm:$0xf]
    %v111 = vld [vmem:[%s3 + $0xc] sm:$0xf]
    %v112 = vld [vmem:[%s3 + $0x10] sm:$0xf]
    %v113 = vld [vmem:[%s3 + $0x14] sm:$0xf]
    %v114 = vld [vmem:[%s3 + $0x18] sm:$0xf]
    %v115 = vld [vmem:[%s3 + $0x1c] sm:$0xf]
    %v116 = vld [vmem:[%s4] sm:$0x1]
    %v117 = vpack.c.bf16 %v107, %v106
    %v119 = vlaneseq
    %v120 = vshrl.u32 %v119, 7
    %v121 = vsub.s32 0, %v120
    %v122 = vrot.slane %v116, %v121
    %v132 = vunpack.c.l.b16 %v108
    %v133 = vunpack.c.l.b16 %v109
    %v134 = vunpack.c.l.b16 %v110
    %v135 = vunpack.c.l.b16 %v111
    %v136 = vunpack.c.l.b16 %v112
    %v137 = vunpack.c.l.b16 %v113
    %v138 = vunpack.c.l.b16 %v114
    %v139 = vunpack.c.l.b16 %v115
    %v140 = vpack.c.b16 %v133, %v132
    %v141 = vpack.c.b16 %v135, %v134
    %v142 = vpack.c.b16 %v137, %v136
    %v143 = vpack.c.b16 %v139, %v138
    %vm148 = vcmask 523264
    %v150 = vsel %vm148, %v117, 0
    %152 = vmatprep.subr.bf16.mxu0 0
    %153 = vmatpush1.bf16.msra.mxu0 %v140
    %154 = vmatprep.subr.bf16.mxu0 0
    %155 = vmatpush1.bf16.msra.mxu0 %v141
    %156 = vmatprep.subr.bf16.mxu0 0
    %157 = vmatpush1.bf16.msra.mxu0 %v142
    %158 = vmatprep.subr.bf16.mxu0 0
    %159 = vmatpush1.bf16.msra.mxu0 %v143
    %160 = vmatprep.subr.bf16.mxu0 0
    %161 = vmatpush1.bf16.msra.mxu0 0
    %162 = vmatprep.subr.bf16.mxu0 0
    %163 = vmatpush1.bf16.msra.mxu0 0
    %164 = vmatprep.subr.bf16.mxu0 0
    %165 = vmatpush1.bf16.msra.mxu0 0
    %166 = vmatprep.subr.bf16.mxu0 0
    %167 = vmatpush1.bf16.msra.mxu0 0
    %168 = vmatprep.subr.bf16.mxu0 0
    %169 = vmatpush1.bf16.msra.mxu0 0
    %170 = vmatprep.subr.bf16.mxu0 0
    %171 = vmatpush1.bf16.msra.mxu0 0
    %172 = vmatprep.subr.bf16.mxu0 0
    %173 = vmatpush1.bf16.msra.mxu0 0
    %174 = vmatprep.subr.bf16.mxu0 0
    %175 = vmatpush1.bf16.msra.mxu0 0
    %176 = vmatprep.subr.bf16.mxu0 0
    %177 = vmatpush1.bf16.msra.mxu0 0
    %178 = vmatprep.subr.bf16.mxu0 0
    %179 = vmatpush1.bf16.msra.mxu0 0
    %180 = vmatprep.subr.bf16.mxu0 0
    %181 = vmatpush1.bf16.msra.mxu0 0
    %182 = vmatprep.subr.bf16.mxu0 0
    %183 = vmatpush1.bf16.msra.mxu0 0
    %184 = vmatprep.mubr.bf16.mxu0 0
    %185 = vmatmul.mubr.bf16.gmra.mrb[0].mxu0 %v150
    %v186 = vpop.f32.mrb[0].mxu0
    %v187 = vadd.f32 %v122, %v186
    %v188 = vpop.f32.mrb[0].mxu0
    %v189 = vpop.f32.mrb[0].mxu0
    %v190 = vadd.f32 %v122, %v189
    %v191 = vpop.f32.mrb[0].mxu0
    %192 = vdwg.mxu0
    %v193 = vmax.f32 %v187, 0.0
    %v194 = vmax.f32 %v190, 0.0
    %195 = vst [vmem:[%s5] sm:$0xff] %v193
    %196 = vst [vmem:[%s5 + $0x8] sm:$0xff] %v194
    // Predicated region
    $region26: #{mlp_forward.1} parent=1 // pred_check
      _
    $region27: #{mlp_forward.1} parent=1 // pred_check_branch
      %198 = sbr.rel (0) target = $region29
    $region28: #{mlp_forward.1} parent=1 // pred_region
      _
    $region29: #{mlp_forward.1} parent=1 // pred_fallthru
      _
    // Predicated region
    $region30: #{mlp_forward.1} parent=1 // pred_check
      _
    $region31: #{mlp_forward.1} parent=1 // pred_check_branch
      %200 = sbr.rel (0) target = $region33
    $region32: #{mlp_forward.1} parent=1 // pred_region
      _
    $region33: #{mlp_forward.1} parent=1 // pred_fallthru
      _
    %201 = vsyncpa [#allocation3], 1

</llo_original>
